<compile_context>
chip_gen: v7x
topology: tpu7x:2x2x1
jax: 0.10.0
libtpu: 0.0.40
codegen_flags: <defaults>
</compile_context>

<pallas_src>
import jax
import jax.numpy as jnp
from jax.experimental import pallas as pl
from jax.experimental.pallas import tpu as pltpu


def _round_up(a: int, b: int) -> int:
    return ((a + b - 1) // b) * b


def _sublane_align(dtype) -> int:
    # second-to-last block dim alignment: f32 -> 8, bf16 -> 16, int8/fp8 -> 32
    return {4: 8, 2: 16, 1: 32}.get(jnp.dtype(dtype).itemsize, 8)


def _tile_prefs(dtype):
    """Per-TPU-generation tile-size caps (tm, tn, tk)."""
    kind = ""
    try:
        kind = jax.devices()[0].device_kind.lower()
    except Exception:
        pass
    itemsize = jnp.dtype(dtype).itemsize
    if "v5" in kind:
        # v5e: 4x128x128 MXU, small (16 MiB) default scoped VMEM -> modest 128-aligned tiles
        return 256, 256, 256
    if "v6" in kind:
        # v6e: 128 MiB VMEM, ~0.35us/grid-step overhead -> bigger tiles for roofline
        return 512, 512, 512
    # v7x (2x256x256 MXU, 64 MiB VMEM) or unknown: conservative, MXU-aligned tiles
    return 256, 256, (512 if itemsize <= 2 else 256)


def _matmul_kernel(x_ref, y_ref, o_ref, acc_ref):
    # x_ref: (tb, tm, tk), y_ref: (tb, tk, tn), o_ref: (tb, tm, tn)
    k = pl.program_id(3)

    @pl.when(k == 0)
    def _():
        acc_ref[...] = jnp.zeros_like(acc_ref)

    acc_ref[...] += jnp.einsum(
        "bmk,bkn->bmn",
        x_ref[...],
        y_ref[...],
        preferred_element_type=jnp.float32,
    )

    @pl.when(k == pl.num_programs(3) - 1)
    def _():
        o_ref[...] = acc_ref[...].astype(o_ref.dtype)


def pallas_matmul(x, y):
    """torch.matmul equivalent for 2-D or 3-D (batched) inputs."""
    # TODO(synk): full torch.matmul broadcasting / 1-D vector cases are not implemented.
    squeeze = False
    if x.ndim == 2 and y.ndim == 2:
        x, y, squeeze = x[None], y[None], True
    assert x.ndim == 3 and y.ndim == 3, "expected 2-D or 3-D inputs"

    B, M, K = x.shape
    B2, K2, N = y.shape
    assert B == B2 and K == K2, "shape mismatch"

    out_dtype = jnp.promote_types(x.dtype, y.dtype)
    tm_pref, tn_pref, tk_pref = _tile_prefs(x.dtype)

    # Pad to hardware-friendly multiples, then clamp tiles to the (padded) dims.
    Mp = _round_up(M, _sublane_align(x.dtype))
    Kp = _round_up(K, 128)
    Np = _round_up(N, 128)

    tm = min(tm_pref, Mp)
    Mp = _round_up(Mp, tm)
    tn = min(tn_pref, Np)           # always >= 128 -> lane-dense output stores
    Np = _round_up(Np, tn)
    tk = min(tk_pref, Kp)
    Kp = _round_up(Kp, tk)

    # Fuse several batch elements per grid step when M is small so the MXU isn't
    # starved and the ~600-cycle per-step overhead is amortized.
    if tm < 128 and B > 1:
        tb = min(B, max(1, 128 // tm))
    else:
        tb = 1
    Bp = _round_up(B, tb)

    if (Bp, Mp, Kp) != (B, M, K):
        x = jnp.pad(x, ((0, Bp - B), (0, Mp - M), (0, Kp - K)))
    if (Bp, Kp, Np) != (B, K, N):
        y = jnp.pad(y, ((0, Bp - B), (0, Kp - K), (0, Np - N)))

    grid = (Bp // tb, Mp // tm, Np // tn, Kp // tk)

    itemsize_in = jnp.dtype(x.dtype).itemsize
    itemsize_out = jnp.dtype(out_dtype).itemsize
    cost = pl.CostEstimate(
        flops=2 * B * M * N * K,
        transcendentals=0,
        bytes_accessed=(Bp * Mp * Kp * itemsize_in
                        + Bp * Kp * Np * itemsize_in
                        + Bp * Mp * Np * itemsize_out),
    )

    out = pl.pallas_call(
        _matmul_kernel,
        out_shape=jax.ShapeDtypeStruct((Bp, Mp, Np), out_dtype),
        grid_spec=pltpu.PrefetchScalarGridSpec(
            num_scalar_prefetch=0,
            grid=grid,
            in_specs=[
                pl.BlockSpec((tb, tm, tk), lambda b, i, j, k: (b, i, k)),
                pl.BlockSpec((tb, tk, tn), lambda b, i, j, k: (b, k, j)),
            ],
            out_specs=pl.BlockSpec((tb, tm, tn), lambda b, i, j, k: (b, i, j)),
            scratch_shapes=[pltpu.VMEM((tb, tm, tn), jnp.float32)],
        ),
        compiler_params=pltpu.CompilerParams(
            dimension_semantics=("parallel", "parallel", "parallel", "arbitrary"),
        ),
        cost_estimate=cost,
    )(x, y)

    out = out[:B, :M, :N]
    if squeeze:
        out = out[0]
    return out


if __name__ == "__main__":
    key = jax.random.PRNGKey(0)
    kx, ky, kx2, ky2 = jax.random.split(key, 4)

    # Test 1: small shapes matching the module's batched matmul forward.
    B, M, K, N = 2, 8, 32, 128
    x = jax.random.normal(kx, (B, M, K), dtype=jnp.float32)
    y = jax.random.normal(ky, (B, K, N), dtype=jnp.float32)
    out = jax.block_until_ready(pallas_matmul(x, y))
    ref = jnp.matmul(x, y)
    assert out.shape == (B, M, N)
    assert jnp.allclose(out, ref, atol=1e-4, rtol=1e-4)

    # Test 2: ragged dims to exercise padding + tiled accumulator path.
    B2, M2, K2, N2 = 2, 72, 200, 264
    x2 = jax.random.normal(kx2, (B2, M2, K2), dtype=jnp.float32)
    y2 = jax.random.normal(ky2, (B2, K2, N2), dtype=jnp.float32)
    out2 = jax.block_until_ready(pallas_matmul(x2, y2))
    ref2 = jnp.matmul(x2, y2)
    assert out2.shape == (B2, M2, N2)
    assert jnp.allclose(out2, ref2, atol=2e-3, rtol=2e-3)

    print("KERNEL_OK")
</pallas_src>

<mosaic_0001>
module attributes {stable_mosaic.version = 11 : i64} {
  func.func @_matmul_kernel(%arg0: i32, %arg1: i32, %arg2: i32, %arg3: i32, %arg4: memref<2x8x128xf32, #tpu.memory_space<vmem>>, %arg5: memref<2x128x128xf32, #tpu.memory_space<vmem>>, %arg6: memref<2x8x128xf32, #tpu.memory_space<vmem>>, %arg7: memref<2x8x128xf32, #tpu.memory_space<vmem>>) attributes {dimension_semantics = [#tpu.dimension_semantics<parallel>, #tpu.dimension_semantics<parallel>, #tpu.dimension_semantics<parallel>, #tpu.dimension_semantics<arbitrary>], iteration_bounds = array<i64: 1, 1, 1, 1>, scalar_prefetch = 0 : i64, scratch_operands = 1 : i64, tpu.core_type = #tpu.core_type<tc>, window_params = [{transform_indices = @transform_0, window_bounds = array<i64: 2, 8, 128>}, {transform_indices = @transform_1, window_bounds = array<i64: 2, 128, 128>}, {transform_indices = @transform_2, window_bounds = array<i64: 2, 8, 128>}]} {
    %c0_i32 = arith.constant 0 : i32
    %0 = arith.cmpi eq, %arg3, %c0_i32 : i32
    %1 = arith.extui %0 : i1 to i32
    %c0_i32_0 = arith.constant 0 : i32
    %2 = arith.cmpi ne, %1, %c0_i32_0 : i32
    scf.if %2 {
      %cst_14 = arith.constant 0.000000e+00 : f32
      %12 = vector.broadcast %cst_14 : f32 to vector<2x8x128xf32>
      %c0_15 = arith.constant 0 : index
      %c0_16 = arith.constant 0 : index
      %c0_17 = arith.constant 0 : index
      %13 = vector.load %arg7[%c0_15, %c0_16, %c0_17] : memref<2x8x128xf32, #tpu.memory_space<vmem>>, vector<2x8x128xf32>
      tpu.vector_store %arg7[%c0_15, %c0_16, %c0_17], %12 {strides = array<i32>} : memref<2x8x128xf32, #tpu.memory_space<vmem>>, vector<2x8x128xf32>,
    } else {
    }
    %c0 = arith.constant 0 : index
    %c0_1 = arith.constant 0 : index
    %c0_2 = arith.constant 0 : index
    %3 = vector.load %arg7[%c0, %c0_1, %c0_2] : memref<2x8x128xf32, #tpu.memory_space<vmem>>, vector<2x8x128xf32>
    %c0_3 = arith.constant 0 : index
    %c0_4 = arith.constant 0 : index
    %c0_5 = arith.constant 0 : index
    %4 = vector.load %arg4[%c0_3, %c0_4, %c0_5] : memref<2x8x128xf32, #tpu.memory_space<vmem>>, vector<2x8x128xf32>
    %c0_6 = arith.constant 0 : index
    %c0_7 = arith.constant 0 : index
    %c0_8 = arith.constant 0 : index
    %5 = vector.load %arg5[%c0_6, %c0_7, %c0_8] : memref<2x128x128xf32, #tpu.memory_space<vmem>>, vector<2x128x128xf32>
    "tpu.trace_start"() <{level = 10 : i32, message = "bmk,bkn->bmn"}> : () -> ()
    %cst = arith.constant dense<0.000000e+00> : vector<2x8x128xf32>
    %6 = tpu.matmul %4, %5, %cst {dimension_numbers = #tpu.dot_dimension_numbers<[2], [1], [1], [2], [0, 0, 0, 1, 1, 2], [0], [0]>} : vector<2x8x128xf32>, vector<2x128x128xf32>, vector<2x8x128xf32> -> vector<2x8x128xf32>
    "tpu.trace_stop"() : () -> ()
    %7 = arith.addf %3, %6 : vector<2x8x128xf32>
    %c0_9 = arith.constant 0 : index
    %c0_10 = arith.constant 0 : index
    %c0_11 = arith.constant 0 : index
    %8 = vector.load %arg7[%c0_9, %c0_10, %c0_11] : memref<2x8x128xf32, #tpu.memory_space<vmem>>, vector<2x8x128xf32>
    tpu.vector_store %arg7[%c0_9, %c0_10, %c0_11], %7 {strides = array<i32>} : memref<2x8x128xf32, #tpu.memory_space<vmem>>, vector<2x8x128xf32>,
    %c0_i32_12 = arith.constant 0 : i32
    %9 = arith.cmpi eq, %arg3, %c0_i32_12 : i32
    %10 = arith.extui %9 : i1 to i32
    %c0_i32_13 = arith.constant 0 : i32
    %11 = arith.cmpi ne, %10, %c0_i32_13 : i32
    scf.if %11 {
      %c0_14 = arith.constant 0 : index
      %c0_15 = arith.constant 0 : index
      %c0_16 = arith.constant 0 : index
      %12 = vector.load %arg7[%c0_14, %c0_15, %c0_16] : memref<2x8x128xf32, #tpu.memory_space<vmem>>, vector<2x8x128xf32>
      %c0_17 = arith.constant 0 : index
      %c0_18 = arith.constant 0 : index
      %c0_19 = arith.constant 0 : index
      %13 = vector.load %arg6[%c0_17, %c0_18, %c0_19] : memref<2x8x128xf32, #tpu.memory_space<vmem>>, vector<2x8x128xf32>
      tpu.vector_store %arg6[%c0_17, %c0_18, %c0_19], %12 {strides = array<i32>} : memref<2x8x128xf32, #tpu.memory_space<vmem>>, vector<2x8x128xf32>,
    } else {
    }
    return
  }
  func.func @transform_0(%arg0: i32, %arg1: i32, %arg2: i32, %arg3: i32) -> (i32, i32, i32) {
    %c0_i32 = arith.constant 0 : i32
    return %arg0, %arg1, %arg3 : i32, i32, i32
  }
  func.func @transform_1(%arg0: i32, %arg1: i32, %arg2: i32, %arg3: i32) -> (i32, i32, i32) {
    %c0_i32 = arith.constant 0 : i32
    return %arg0, %arg3, %arg2 : i32, i32, i32
  }
  func.func @transform_2(%arg0: i32, %arg1: i32, %arg2: i32, %arg3: i32) -> (i32, i32, i32) {
    %c0_i32 = arith.constant 0 : i32
    return %arg0, %arg1, %arg2 : i32, i32, i32
  }
}

</mosaic_0001>

<llo_original>
// kernel: tpu_custom_call.1
$region0: #{tpu_custom_call.1}
  #allocation0 [shape = 'u32[]', space=smem, size = 0x4, offset = 0x4, fixed_abs, tag = 'smem constant byte address 0x4 - core index']
  #allocation1 [shape = 'u32[144,128]{1,0:T(1,128)}', space=vmem, size = 0x12000, scoped, tag = 'internal scratch']
  #allocation2 [shape = 'f32[2,8,128]{2,1,0:T(8,128)}', space=vmem, size = 0x2000, scoped, tag = 'scratch operand']
  %s0 = inlined_call_operand.hbm [shape: f32[2,8,128], index: 0, kind: input, shape index: {}]
  %s1 = inlined_call_operand.hbm [shape: f32[2,128,128], index: 1, kind: input, shape index: {}]
  %s2 = inlined_call_operand.hbm [shape: f32[2,8,128], index: 2, kind: output, shape index: {}]
  %s3 = sld [smem:[#allocation0]]
  $region34: #{tpu_custom_call.1} parent=0
    _
  %s5 = ssub.s32 1, %s3
  %s6 = scalar_select 0, %s5, %s3
  $region1: #{tpu_custom_call.1} parent=0
    #allocation3 [shape = 'u8[8192]{0}', space=vmem, size = 0x2000, scoped, tag = 'input window, operand 0, single buffered']
    #allocation4 [shape = 's32[1]{0}', space=sflag, size = 0x4, scoped, tag = 'scoped memory for tpu_custom_call.1']
    #allocation5 [shape = 's32[1]{0}', space=sflag, size = 0x4, scoped, tag = 'scoped memory for tpu_custom_call.1']
    #allocation6 [shape = 'u8[131072]{0}', space=vmem, size = 0x20000, scoped, tag = 'input window, operand 1, single buffered']
    #allocation7 [shape = 's32[1]{0}', space=sflag, size = 0x4, scoped, tag = 'scoped memory for tpu_custom_call.1']
    #allocation8 [shape = 'u8[8192]{0}', space=vmem, size = 0x2000, scoped, tag = 'output window, operand 0, single buffered']
    %7 = vsyncpa [#allocation4], 0
    %8 = vsyncpa [#allocation7], 0
    %9 = vsyncpa [#allocation5], 0
    // Predicated region
    $region2: #{tpu_custom_call.1} parent=1 // pred_check
      _
    $region3: #{tpu_custom_call.1} parent=1 // pred_check_branch
      %11 = sbr.rel (0) target = $region5
    $region4: #{tpu_custom_call.1} parent=1 // pred_region
      %s13 = ssub.s32 256, 256
      %14 = vsyncadd [#allocation4], %s13
      %s15 = sshll.u32 [#allocation3], 4
      %s16 = int_to_ptr.vmem [resolvable:$true] %s15
      %21 = dma.hbm_to_vmem [thread:$0]  %s0, 256, %s16, [#allocation4], 128, 128, 8
    $region5: #{tpu_custom_call.1} parent=1 // pred_fallthru
      _
    // Predicated region
    $region6: #{tpu_custom_call.1} parent=1 // pred_check
      _
    $region7: #{tpu_custom_call.1} parent=1 // pred_check_branch
      %23 = sbr.rel (0) target = $region9
    $region8: #{tpu_custom_call.1} parent=1 // pred_region
      %s25 = ssub.s32 4096, 4096
      %26 = vsyncadd [#allocation7], %s25
      %s27 = sshll.u32 [#allocation6], 4
      %s28 = int_to_ptr.vmem [resolvable:$true] %s27
      %33 = dma.hbm_to_vmem [thread:$0]  %s1, 4096, %s28, [#allocation7], 128, 128, 8
    $region9: #{tpu_custom_call.1} parent=1 // pred_fallthru
      _
    // Predicated region
    $region10: #{tpu_custom_call.1} parent=1 // pred_check
      _
    $region11: #{tpu_custom_call.1} parent=1 // pred_check_branch
      %35 = sbr.rel (0) target = $region13
    $region12: #{tpu_custom_call.1} parent=1 // pred_region
      %36 = dma.done [#allocation4], 256
    $region13: #{tpu_custom_call.1} parent=1 // pred_fallthru
      _
    // Predicated region
    $region14: #{tpu_custom_call.1} parent=1 // pred_check
      _
    $region15: #{tpu_custom_call.1} parent=1 // pred_check_branch
      %38 = sbr.rel (0) target = $region17
    $region16: #{tpu_custom_call.1} parent=1 // pred_region
      %39 = dma.done [#allocation7], 4096
    $region17: #{tpu_custom_call.1} parent=1 // pred_fallthru
      _
    %p40 = scmp.eq.s32.totalorder 0, 0
    // Predicated region
    $region18: #{tpu_custom_call.1} parent=1 // pred_check
      %p41 = pneg %p40
    $region19: #{tpu_custom_call.1} parent=1 // pred_check_branch
      %43 = sbr.rel (%p41) target = $region21
    $region20: #{tpu_custom_call.1} parent=1 // pred_region
      %44 = vst [vmem:[#allocation2] sm:$0xff] 0.0
      %45 = vst [vmem:[#allocation2 + $0x8] sm:$0xff] 0.0
    $region21: #{tpu_custom_call.1} parent=1 // pred_fallthru
      _
    %v46 = vld [vmem:[#allocation2] sm:$0xff]
    %v47 = vld [vmem:[#allocation2 + $0x8] sm:$0xff]
    %v48 = vld [vmem:[#allocation3] sm:$0xff]
    %v49 = vld [vmem:[#allocation3 + $0x8] sm:$0xff]
    %v50 = vld [vmem:[#allocation6] sm:$0xff]
    %v51 = vld [vmem:[#allocation6 + $0x8] sm:$0xff]
    %v52 = vld [vmem:[#allocation6 + $0x10] sm:$0xff]
    %v53 = vld [vmem:[#allocation6 + $0x18] sm:$0xff]
    %v54 = vld [vmem:[#allocation6 + $0x20] sm:$0xff]
    %v55 = vld [vmem:[#allocation6 + $0x28] sm:$0xff]
    %v56 = vld [vmem:[#allocation6 + $0x30] sm:$0xff]
    %v57 = vld [vmem:[#allocation6 + $0x38] sm:$0xff]
    %v58 = vld [vmem:[#allocation6 + $0x40] sm:$0xff]
    %v59 = vld [vmem:[#allocation6 + $0x48] sm:$0xff]
    %v60 = vld [vmem:[#allocation6 + $0x50] sm:$0xff]
    %v61 = vld [vmem:[#allocation6 + $0x58] sm:$0xff]
    %v62 = vld [vmem:[#allocation6 + $0x60] sm:$0xff]
    %v63 = vld [vmem:[#allocation6 + $0x68] sm:$0xff]
    %v64 = vld [vmem:[#allocation6 + $0x70] sm:$0xff]
    %v65 = vld [vmem:[#allocation6 + $0x78] sm:$0xff]
    %v66 = vld [vmem:[#allocation6 + $0x80] sm:$0xff]
    %v67 = vld [vmem:[#allocation6 + $0x88] sm:$0xff]
    %v68 = vld [vmem:[#allocation6 + $0x90] sm:$0xff]
    %v69 = vld [vmem:[#allocation6 + $0x98] sm:$0xff]
    %v70 = vld [vmem:[#allocation6 + $0xa0] sm:$0xff]
    %v71 = vld [vmem:[#allocation6 + $0xa8] sm:$0xff]
    %v72 = vld [vmem:[#allocation6 + $0xb0] sm:$0xff]
    %v73 = vld [vmem:[#allocation6 + $0xb8] sm:$0xff]
    %v74 = vld [vmem:[#allocation6 + $0xc0] sm:$0xff]
    %v75 = vld [vmem:[#allocation6 + $0xc8] sm:$0xff]
    %v76 = vld [vmem:[#allocation6 + $0xd0] sm:$0xff]
    %v77 = vld [vmem:[#allocation6 + $0xd8] sm:$0xff]
    %v78 = vld [vmem:[#allocation6 + $0xe0] sm:$0xff]
    %v79 = vld [vmem:[#allocation6 + $0xe8] sm:$0xff]
    %v80 = vld [vmem:[#allocation6 + $0xf0] sm:$0xff]
    %v81 = vld [vmem:[#allocation6 + $0xf8] sm:$0xff]
    %82 = vmatprep.subr.mxu0 0.0
    %83 = vmatpush1.msra.mxu0 %v50
    %84 = vmatprep.subr.mxu0 0.0
    %85 = vmatpush1.msra.mxu0 %v51
    %86 = vmatprep.subr.mxu0 0.0
    %87 = vmatpush1.msra.mxu0 %v52
    %88 = vmatprep.subr.mxu0 0.0
    %89 = vmatpush1.msra.mxu0 %v53
    %90 = vmatprep.subr.mxu0 0.0
    %91 = vmatpush1.msra.mxu0 %v54
    %92 = vmatprep.subr.mxu0 0.0
    %93 = vmatpush1.msra.mxu0 %v55
    %94 = vmatprep.subr.mxu0 0.0
    %95 = vmatpush1.msra.mxu0 %v56
    %96 = vmatprep.subr.mxu0 0.0
    %97 = vmatpush1.msra.mxu0 %v57
    %98 = vmatprep.subr.mxu0 0.0
    %99 = vmatpush1.msra.mxu0 %v58
    %100 = vmatprep.subr.mxu0 0.0
    %101 = vmatpush1.msra.mxu0 %v59
    %102 = vmatprep.subr.mxu0 0.0
    %103 = vmatpush1.msra.mxu0 %v60
    %104 = vmatprep.subr.mxu0 0.0
    %105 = vmatpush1.msra.mxu0 %v61
    %106 = vmatprep.subr.mxu0 0.0
    %107 = vmatpush1.msra.mxu0 %v62
    %108 = vmatprep.subr.mxu0 0.0
    %109 = vmatpush1.msra.mxu0 %v63
    %110 = vmatprep.subr.mxu0 0.0
    %111 = vmatpush1.msra.mxu0 %v64
    %112 = vmatprep.subr.mxu0 0.0
    %113 = vmatpush1.msra.mxu0 %v65
    %114 = vmatprep.subr.mxu0 0.0
    %115 = vmatpush1.msra.mxu0 0.0
    %116 = vmatprep.subr.mxu0 0.0
    %117 = vmatpush1.msra.mxu0 0.0
    %118 = vmatprep.subr.mxu0 0.0
    %119 = vmatpush1.msra.mxu0 0.0
    %120 = vmatprep.subr.mxu0 0.0
    %121 = vmatpush1.msra.mxu0 0.0
    %122 = vmatprep.subr.mxu0 0.0
    %123 = vmatpush1.msra.mxu0 0.0
    %124 = vmatprep.subr.mxu0 0.0
    %125 = vmatpush1.msra.mxu0 0.0
    %126 = vmatprep.subr.mxu0 0.0
    %127 = vmatpush1.msra.mxu0 0.0
    %128 = vmatprep.subr.mxu0 0.0
    %129 = vmatpush1.msra.mxu0 0.0
    %130 = vmatprep.subr.mxu0 0.0
    %131 = vmatpush1.msra.mxu0 0.0
    %132 = vmatprep.subr.mxu0 0.0
    %133 = vmatpush1.msra.mxu0 0.0
    %134 = vmatprep.subr.mxu0 0.0
    %135 = vmatpush1.msra.mxu0 0.0
    %136 = vmatprep.subr.mxu0 0.0
    %137 = vmatpush1.msra.mxu0 0.0
    %138 = vmatprep.subr.mxu0 0.0
    %139 = vmatpush1.msra.mxu0 0.0
    %140 = vmatprep.subr.mxu0 0.0
    %141 = vmatpush1.msra.mxu0 0.0
    %142 = vmatprep.subr.mxu0 0.0
    %143 = vmatpush1.msra.mxu0 0.0
    %144 = vmatprep.subr.mxu0 0.0
    %145 = vmatpush1.msra.mxu0 0.0
    %146 = vmatprep.mubr.f32.mxu0 0.0
    %147 = vmatmul.mubr.f32.gmra.mrb[0].mxu0 %v48
    %v148 = vpop.f32.mrb[0].mxu0
    %v149 = vadd.f32 0.0, %v148
    %v150 = vpop.f32.mrb[0].mxu0
    %151 = vdwg.mxu0
    %152 = vmatprep.subr.mxu0 0.0
    %153 = vmatpush1.msra.mxu0 %v66
    %154 = vmatprep.subr.mxu0 0.0
    %155 = vmatpush1.msra.mxu0 %v67
    %156 = vmatprep.subr.mxu0 0.0
    %157 = vmatpush1.msra.mxu0 %v68
    %158 = vmatprep.subr.mxu0 0.0
    %159 = vmatpush1.msra.mxu0 %v69
    %160 = vmatprep.subr.mxu0 0.0
    %161 = vmatpush1.msra.mxu0 %v70
    %162 = vmatprep.subr.mxu0 0.0
    %163 = vmatpush1.msra.mxu0 %v71
    %164 = vmatprep.subr.mxu0 0.0
    %165 = vmatpush1.msra.mxu0 %v72
    %166 = vmatprep.subr.mxu0 0.0
    %167 = vmatpush1.msra.mxu0 %v73
    %168 = vmatprep.subr.mxu0 0.0
    %169 = vmatpush1.msra.mxu0 %v74
    %170 = vmatprep.subr.mxu0 0.0
    %171 = vmatpush1.msra.mxu0 %v75
    %172 = vmatprep.subr.mxu0 0.0
    %173 = vmatpush1.msra.mxu0 %v76
    %174 = vmatprep.subr.mxu0 0.0
    %175 = vmatpush1.msra.mxu0 %v77
    %176 = vmatprep.subr.mxu0 0.0
    %177 = vmatpush1.msra.mxu0 %v78
    %178 = vmatprep.subr.mxu0 0.0
    %179 = vmatpush1.msra.mxu0 %v79
    %180 = vmatprep.subr.mxu0 0.0
    %181 = vmatpush1.msra.mxu0 %v80
    %182 = vmatprep.subr.mxu0 0.0
    %183 = vmatpush1.msra.mxu0 %v81
    %184 = vmatprep.subr.mxu0 0.0
    %185 = vmatpush1.msra.mxu0 0.0
    %186 = vmatprep.subr.mxu0 0.0
    %187 = vmatpush1.msra.mxu0 0.0
    %188 = vmatprep.subr.mxu0 0.0
    %189 = vmatpush1.msra.mxu0 0.0
    %190 = vmatprep.subr.mxu0 0.0
    %191 = vmatpush1.msra.mxu0 0.0
    %192 = vmatprep.subr.mxu0 0.0
    %193 = vmatpush1.msra.mxu0 0.0
    %194 = vmatprep.subr.mxu0 0.0
    %195 = vmatpush1.msra.mxu0 0.0
    %196 = vmatprep.subr.mxu0 0.0
    %197 = vmatpush1.msra.mxu0 0.0
    %198 = vmatprep.subr.mxu0 0.0
    %199 = vmatpush1.msra.mxu0 0.0
    %200 = vmatprep.subr.mxu0 0.0
    %201 = vmatpush1.msra.mxu0 0.0
    %202 = vmatprep.subr.mxu0 0.0
    %203 = vmatpush1.msra.mxu0 0.0
    %204 = vmatprep.subr.mxu0 0.0
    %205 = vmatpush1.msra.mxu0 0.0
    %206 = vmatprep.subr.mxu0 0.0
    %207 = vmatpush1.msra.mxu0 0.0
    %208 = vmatprep.subr.mxu0 0.0
    %209 = vmatpush1.msra.mxu0 0.0
    %210 = vmatprep.subr.mxu0 0.0
    %211 = vmatpush1.msra.mxu0 0.0
    %212 = vmatprep.subr.mxu0 0.0
    %213 = vmatpush1.msra.mxu0 0.0
    %214 = vmatprep.subr.mxu0 0.0
    %215 = vmatpush1.msra.mxu0 0.0
    %216 = vmatprep.mubr.f32.mxu0 0.0
    %217 = vmatmul.mubr.f32.gmra.mrb[0].mxu0 %v49
    %v218 = vpop.f32.mrb[0].mxu0
    %v219 = vadd.f32 0.0, %v218
    %v220 = vpop.f32.mrb[0].mxu0
    %221 = vdwg.mxu0
    %v222 = vadd.f32 %v46, %v149
    %v223 = vadd.f32 %v47, %v219
    %224 = vst [vmem:[#allocation2] sm:$0xff] %v222
    %225 = vst [vmem:[#allocation2 + $0x8] sm:$0xff] %v223
    // Predicated region
    $region22: #{tpu_custom_call.1} parent=1 // pred_check
      %p226 = pneg %p40
    $region23: #{tpu_custom_call.1} parent=1 // pred_check_branch
      %228 = sbr.rel (%p226) target = $region25
    $region24: #{tpu_custom_call.1} parent=1 // pred_region
      %v229 = vld [vmem:[#allocation2] sm:$0xff]
      %v230 = vld [vmem:[#allocation2 + $0x8] sm:$0xff]
      %231 = vst [vmem:[#allocation8] sm:$0xff] %v229
      %232 = vst [vmem:[#allocation8 + $0x8] sm:$0xff] %v230
    $region25: #{tpu_custom_call.1} parent=1 // pred_fallthru
      _
    // Predicated region
    $region26: #{tpu_custom_call.1} parent=1 // pred_check
      _
    $region27: #{tpu_custom_call.1} parent=1 // pred_check_branch
      %234 = sbr.rel (0) target = $region29
    $region28: #{tpu_custom_call.1} parent=1 // pred_region
      %s236 = ssub.s32 256, 256
      %237 = vsyncadd [#allocation5], %s236
      %s238 = sshll.u32 [#allocation8], 4
      %s239 = int_to_ptr.vmem [resolvable:$true] %s238
      %244 = dma.vmem_to_hbm [thread:$0]  %s239, 256, %s2, [#allocation5], 128, 128, 8
    $region29: #{tpu_custom_call.1} parent=1 // pred_fallthru
      _
    // Predicated region
    $region30: #{tpu_custom_call.1} parent=1 // pred_check
      _
    $region31: #{tpu_custom_call.1} parent=1 // pred_check_branch
      %246 = sbr.rel (0) target = $region33
    $region32: #{tpu_custom_call.1} parent=1 // pred_region
      %247 = dma.done [#allocation5], 256
    $region33: #{tpu_custom_call.1} parent=1 // pred_fallthru
      _
    %248 = vsyncpa [#allocation4], 1
    %249 = vsyncpa [#allocation7], 1
    %250 = vsyncpa [#allocation5], 1

</llo_original>
